<compile_context>
chip_gen: v6e
topology: v6e:2x2x1
jax: 0.10.0
libtpu: 0.0.40
codegen_flags: <defaults>
</compile_context>

<pallas_src>
import functools

import jax
import jax.numpy as jnp
from jax.experimental import pallas as pl
from jax.experimental.pallas import tpu as pltpu


def _round_up(v, m):
    return (v + m - 1) // m * m


def _cdiv(a, b):
    return -(-a // b)


# ----------------------------------------------------------------------------
# One-time capability probes (cached).  Both features are pure performance
# upgrades; if the running jax / backend rejects them we silently fall back.
# ----------------------------------------------------------------------------

def _copy_probe_kernel(x_ref, o_ref):
    o_ref[...] = x_ref[...]


@functools.lru_cache(maxsize=None)
def _buffered_one_supported():
    """pipeline_mode=pl.Buffered(1) single-buffers constant-index weight blocks
    (halves resident-weight VMEM).  Probe once; older jax may reject it."""
    try:
        out = pl.pallas_call(
            _copy_probe_kernel,
            out_shape=jax.ShapeDtypeStruct((8, 128), jnp.float32),
            grid=(1,),
            in_specs=[pl.BlockSpec((8, 128), lambda i: (0, 0),
                                   pipeline_mode=pl.Buffered(buffer_count=1))],
            out_specs=pl.BlockSpec((8, 128), lambda i: (0, 0)),
        )(jnp.zeros((8, 128), jnp.float32))
        jax.block_until_ready(out)
        return True
    except Exception:
        return False


def _as_u32(x):
    return x if x.dtype == jnp.uint32 else pltpu.bitcast(x, jnp.uint32)


def _prng_probe_kernel(o_ref):
    pltpu.prng_seed(0)
    o_ref[...] = _as_u32(pltpu.prng_random_bits((8, 128)))


@functools.lru_cache(maxsize=None)
def _device_prng_supported():
    """In-kernel hardware PRNG for dropout (no dropout-mask HBM traffic).
    Probe once; CPU / interpret backends have no lowering for it."""
    try:
        out = pl.pallas_call(
            _prng_probe_kernel,
            out_shape=jax.ShapeDtypeStruct((8, 128), jnp.uint32),
        )()
        jax.block_until_ready(out)
        return True
    except Exception:
        return False


# ----------------------------------------------------------------------------
# Kernel
# ----------------------------------------------------------------------------

def _ffn_kernel(*refs, mode, keep_threshold, inv_keep, precision):
    """One (row-tile i, hidden-tile k) step of
    out = dropout(relu(x @ w1 + b1)) @ w2 + b2, accumulated over k."""
    if mode == "train_prng":
        seed_ref, x_ref, w1_ref, b1_ref, w2_ref, b2_ref, o_ref, acc_ref = refs
    elif mode == "train_bits":
        x_ref, bits_ref, w1_ref, b1_ref, w2_ref, b2_ref, o_ref, acc_ref = refs
    else:  # eval
        x_ref, w1_ref, b1_ref, w2_ref, b2_ref, o_ref, acc_ref = refs

    k = pl.program_id(1)
    nk = pl.num_programs(1)

    @pl.when(k == 0)
    def _():
        acc_ref[...] = jnp.zeros_like(acc_ref)

    # First matmul (MXU, f32 accumulation) + bias + ReLU on this hidden slice.
    h = jnp.dot(x_ref[...], w1_ref[...],
                preferred_element_type=jnp.float32, precision=precision)
    h = jnp.maximum(h + b1_ref[...].astype(jnp.float32), 0.0)

    if mode == "train_bits":
        # keep with prob 1-p  <=>  u8 >= round(p*256)   (1/256 granularity)
        h = jnp.where(bits_ref[...] >= jnp.uint8(keep_threshold), h, 0.0)
    elif mode == "train_prng":
        # Unique stream per grid step; seed folds in the caller's rng_key.
        pltpu.prng_seed(seed_ref[0] + pl.program_id(0) * nk + k)
        rbits = _as_u32(pltpu.prng_random_bits(h.shape))
        h = jnp.where(rbits >= jnp.uint32(keep_threshold), h, 0.0)

    # Second matmul: accumulate this hidden slice's contribution.
    acc_ref[...] += jnp.dot(h.astype(w2_ref.dtype), w2_ref[...],
                            preferred_element_type=jnp.float32,
                            precision=precision)

    @pl.when(k == nk - 1)
    def _():
        out = acc_ref[...]
        if mode != "eval":
            # Deferred, exact 1/(1-p) rescale (linear => can follow the matmul).
            out = out * jnp.float32(inv_keep)
        o_ref[...] = (out + b2_ref[...].astype(jnp.float32)).astype(o_ref.dtype)


def _pick_tk(d_model_p, hidden_p, tm, cbytes, obytes, bits_bytes, budget):
    """Largest hidden tile tk (multiple of 128) whose per-step VMEM fits budget."""
    def est(tk, wbufs):
        weights = wbufs * 2 * d_model_p * tk * cbytes           # w1 + w2 slices
        stream = 2 * tm * d_model_p * (cbytes + obytes)         # x / out tiles
        stream += 2 * tm * tk * bits_bytes                      # dropout bits tiles
        scratch = tm * d_model_p * 4 + tm * tk * 4              # acc + h intermediate
        biases = 4 * (tk + d_model_p) * 4
        return weights + stream + scratch + biases

    if est(hidden_p, 2) <= budget:          # fully resident weights
        return hidden_p
    nk = 2
    while True:
        tk = _round_up(_cdiv(hidden_p, nk), 128)
        if tk <= 128 or est(tk, 2) <= budget:
            return max(tk, 128)
        nk += 1


# ----------------------------------------------------------------------------
# Wrapper
# ----------------------------------------------------------------------------

def feed_forward(x, w1, b1, w2, b2, *, dropout_rate=0.3, training=False,
                 rng_key=None, compute_dtype=jnp.bfloat16, tm=256,
                 use_device_prng=None, precision=None,
                 vmem_budget_bytes=40 * 1024 * 1024):
    """x: [B, S, d_model] -> [B, S, d_model].  Matches torch FeedForward.forward.

    compute_dtype=bfloat16 (default) feeds the MXU at full rate with f32
    accumulation; use compute_dtype=jnp.float32 (optionally
    precision=jax.lax.Precision.HIGHEST) for strict f32 math.  Pass a fresh
    rng_key every training step.  Weights already padded to 128-multiples and in
    compute_dtype are used without any per-call copy.
    """
    B, S, d_model = x.shape
    hidden = w1.shape[1]
    M = B * S
    out_dtype = x.dtype
    cdt = jnp.dtype(compute_dtype)

    # ---- row tiling (parallel axis; give megacore >= 2 tiles when worthwhile)
    m_pad8 = _round_up(M, 8)
    tm = max(8, min(tm, m_pad8))
    if m_pad8 // tm < 2 and m_pad8 >= 64:
        tm = max(32, _round_up(_cdiv(m_pad8, 2), 32))
    M_pad = _round_up(M, tm)

    # ---- dropout mode
    use_dropout = bool(training) and float(dropout_rate) > 0.0
    if not use_dropout:
        use_device_prng = False
    elif use_device_prng is None:
        use_device_prng = _device_prng_supported()

    # ---- hidden (K) tiling under the VMEM budget
    d_model_p = _round_up(d_model, 128)
    hidden_p = _round_up(hidden, 128)
    bits_bytes = 1 if (use_dropout and not use_device_prng) else 0
    tk = _pick_tk(d_model_p, hidden_p, tm, cdt.itemsize,
                  jnp.dtype(out_dtype).itemsize, bits_bytes, vmem_budget_bytes)
    hidden_pad = _round_up(hidden, tk)
    nk = hidden_pad // tk

    # ---- pad / cast operands (no-ops when already padded & in compute_dtype)
    def pad2d(a, shape):
        if a.shape == shape and a.dtype == cdt:
            return a
        return jnp.zeros(shape, cdt).at[:a.shape[0], :a.shape[1]].set(a.astype(cdt))

    def pad_bias(b, n):
        b = b.reshape(1, -1).astype(jnp.float32)
        if b.shape[1] == n:
            return b
        return jnp.zeros((1, n), jnp.float32).at[:, :b.shape[1]].set(b)

    x2d = x.reshape(M, d_model)
    if (M, d_model) == (M_pad, d_model_p):
        xp = x2d.astype(cdt)
    else:
        xp = jnp.zeros((M_pad, d_model_p), cdt).at[:M, :d_model].set(x2d.astype(cdt))
    w1p = pad2d(w1, (d_model_p, hidden_pad))
    w2p = pad2d(w2, (hidden_pad, d_model_p))
    b1p = pad_bias(b1, hidden_pad)
    b2p = pad_bias(b2, d_model_p)

    # ---- block specs (weights single-buffered when fully resident)
    resident = (nk == 1) and _buffered_one_supported()
    wkw = dict(pipeline_mode=pl.Buffered(buffer_count=1)) if resident else {}
    x_spec = pl.BlockSpec((tm, d_model_p), lambda i, k: (i, 0))
    w1_spec = pl.BlockSpec((d_model_p, tk), lambda i, k: (0, k), **wkw)
    b1_spec = pl.BlockSpec((1, tk), lambda i, k: (0, k), **wkw)
    w2_spec = pl.BlockSpec((tk, d_model_p), lambda i, k: (k, 0), **wkw)
    b2_spec = pl.BlockSpec((1, d_model_p), lambda i, k: (0, 0), **wkw)
    o_spec = pl.BlockSpec((tm, d_model_p), lambda i, k: (i, 0))

    mode = "eval"
    keep_threshold = 0
    inv_keep = 1.0
    operands = [xp, w1p, b1p, w2p, b2p]
    in_specs = [x_spec, w1_spec, b1_spec, w2_spec, b2_spec]
    if use_dropout:
        inv_keep = 1.0 / (1.0 - float(dropout_rate))
        if rng_key is None:
            rng_key = jax.random.PRNGKey(0)
        if use_device_prng:
            mode = "train_prng"
            # keep iff u32 >= p*2^32 (clamped: p ~= 1.0 keeps w.p. 2^-32, not 0)
            keep_threshold = min(int(round(float(dropout_rate) * 2.0 ** 32)),
                                 2 ** 32 - 1)
            seed = jax.random.randint(rng_key, (1,), 0, 2 ** 31 - 1,
                                      dtype=jnp.int32)
            operands = [seed] + operands
            in_specs = ([pl.BlockSpec(memory_space=pltpu.MemorySpace.SMEM)]
                        + in_specs)
        else:
            mode = "train_bits"
            keep_threshold = min(int(round(float(dropout_rate) * 256.0)), 255)
            bits = jax.random.bits(rng_key, (M_pad, hidden_pad), dtype=jnp.uint8)
            operands = [xp, bits, w1p, b1p, w2p, b2p]
            in_specs = [x_spec, pl.BlockSpec((tm, tk), lambda i, k: (i, k)),
                        w1_spec, b1_spec, w2_spec, b2_spec]

    # ---- explicit scoped-VMEM limit (defaults are only 16/32 MiB)
    wbufs = 1 if resident else 2
    est = (wbufs * 2 * d_model_p * tk * cdt.itemsize
           + 2 * tm * d_model_p * (cdt.itemsize + jnp.dtype(out_dtype).itemsize)
           + tm * d_model_p * 4 + tm * tk * 4
           + 2 * tm * tk * bits_bytes
           + 4 * (tk + d_model_p) * 4)
    vmem_limit = int(min(max(int(est * 1.4) + (2 << 20), 32 << 20), 56 << 20))

    kernel = functools.partial(_ffn_kernel, mode=mode,
                               keep_threshold=keep_threshold,
                               inv_keep=inv_keep, precision=precision)

    out2d = pl.pallas_call(
        kernel,
        out_shape=jax.ShapeDtypeStruct((M_pad, d_model_p), out_dtype),
        grid=(M_pad // tm, nk),
        in_specs=in_specs,
        out_specs=o_spec,
        scratch_shapes=[pltpu.VMEM((tm, d_model_p), jnp.float32)],
        compiler_params=pltpu.CompilerParams(
            dimension_semantics=("parallel", "arbitrary"),
            vmem_limit_bytes=vmem_limit),
    )(*operands)

    return out2d[:M, :d_model].reshape(B, S, d_model)


def init_params(key, d_model, hidden):
    """Deterministic init matching nn.Linear's U(-1/sqrt(fan_in), 1/sqrt(fan_in))."""
    k1, k2, k3, k4 = jax.random.split(key, 4)
    lim1 = 1.0 / jnp.sqrt(d_model)
    lim2 = 1.0 / jnp.sqrt(hidden)
    # stored transposed vs. torch: w1 [d_model, hidden], w2 [hidden, d_model]
    w1 = jax.random.uniform(k1, (d_model, hidden), jnp.float32, -lim1, lim1)
    b1 = jax.random.uniform(k2, (hidden,), jnp.float32, -lim1, lim1)
    w2 = jax.random.uniform(k3, (hidden, d_model), jnp.float32, -lim2, lim2)
    b2 = jax.random.uniform(k4, (d_model,), jnp.float32, -lim2, lim2)
    return w1, b1, w2, b2


if __name__ == "__main__":
    d_model, hidden = 32, 64
    B, S = 2, 8

    key = jax.random.PRNGKey(0)
    kx, kp, kd = jax.random.split(key, 3)
    x = jax.random.normal(kx, (B, S, d_model), dtype=jnp.float32)
    w1, b1, w2, b2 = init_params(kp, d_model, hidden)

    ref = jnp.maximum(x @ w1 + b1, 0.0) @ w2 + b2

    # 1) eval, strict f32 compute path
    out_f32 = jax.block_until_ready(
        feed_forward(x, w1, b1, w2, b2, training=False,
                     compute_dtype=jnp.float32))
    assert out_f32.shape == (B, S, d_model)
    assert jnp.allclose(out_f32, ref, atol=1e-5, rtol=1e-5)

    # 2) eval, bf16 MXU fast path (default)
    out_bf16 = jax.block_until_ready(
        feed_forward(x, w1, b1, w2, b2, training=False))
    assert jnp.allclose(out_bf16, ref, atol=5e-2, rtol=5e-2)

    # 3) train: dropout active (in-kernel PRNG if supported, else host u8 bits)
    out_tr = jax.block_until_ready(
        feed_forward(x, w1, b1, w2, b2, dropout_rate=0.3, training=True,
                     rng_key=kd))
    assert out_tr.shape == (B, S, d_model)
    assert bool(jnp.all(jnp.isfinite(out_tr)))
    assert not jnp.allclose(out_tr, out_bf16, atol=1e-6, rtol=1e-6)

    # 4) train: explicit host-uint8-bits fallback path
    out_tr2 = jax.block_until_ready(
        feed_forward(x, w1, b1, w2, b2, dropout_rate=0.3, training=True,
                     rng_key=kd, use_device_prng=False))
    assert bool(jnp.all(jnp.isfinite(out_tr2)))
    assert not jnp.allclose(out_tr2, out_bf16, atol=1e-6, rtol=1e-6)

    print("KERNEL_OK")
</pallas_src>

<mosaic_0001>
module attributes {stable_mosaic.version = 11 : i64} {
  func.func @_copy_probe_kernel(%arg0: i32, %arg1: memref<8x128xf32, #tpu.memory_space<vmem>>, %arg2: memref<8x128xf32, #tpu.memory_space<vmem>>) attributes {dimension_semantics = [#tpu.dimension_semantics<arbitrary>], iteration_bounds = array<i64: 1>, scalar_prefetch = 0 : i64, scratch_operands = 0 : i64, tpu.core_type = #tpu.core_type<tc>, window_params = [{pipeline_mode = #tpu.pipeline_mode<synchronous>, transform_indices = @transform_0, window_bounds = array<i64: 8, 128>}, {pipeline_mode = #tpu.pipeline_mode<synchronous>, transform_indices = @transform_1, window_bounds = array<i64: 8, 128>}]} {
    %c0 = arith.constant 0 : index
    %c0_0 = arith.constant 0 : index
    %0 = vector.load %arg1[%c0, %c0_0] : memref<8x128xf32, #tpu.memory_space<vmem>>, vector<8x128xf32>
    %c0_1 = arith.constant 0 : index
    %c0_2 = arith.constant 0 : index
    %1 = vector.load %arg2[%c0_1, %c0_2] : memref<8x128xf32, #tpu.memory_space<vmem>>, vector<8x128xf32>
    tpu.vector_store %arg2[%c0_1, %c0_2], %0 {strides = array<i32>} : memref<8x128xf32, #tpu.memory_space<vmem>>, vector<8x128xf32>,
    return
  }
  func.func @transform_0(%arg0: i32) -> (i32, i32) {
    %c0_i32 = arith.constant 0 : i32
    %c0_i32_0 = arith.constant 0 : i32
    %c0_i32_1 = arith.constant 0 : i32
    return %c0_i32, %c0_i32_0 : i32, i32
  }
  func.func @transform_1(%arg0: i32) -> (i32, i32) {
    %c0_i32 = arith.constant 0 : i32
    %c0_i32_0 = arith.constant 0 : i32
    %c0_i32_1 = arith.constant 0 : i32
    return %c0_i32, %c0_i32_0 : i32, i32
  }
}

module attributes {stable_mosaic.version = 11 : i64} {
  func.func @_ffn_kernel(%arg0: i32, %arg1: i32, %arg2: memref<16x128xf32, #tpu.memory_space<vmem>>, %arg3: memref<128x128xf32, #tpu.memory_space<vmem>>, %arg4: memref<1x128xf32, #tpu.memory_space<vmem>>, %arg5: memref<128x128xf32, #tpu.memory_space<vmem>>, %arg6: memref<1x128xf32, #tpu.memory_space<vmem>>, %arg7: memref<16x128xf32, #tpu.memory_space<vmem>>, %arg8: memref<16x128xf32, #tpu.memory_space<vmem>>) attributes {dimension_semantics = [#tpu.dimension_semantics<parallel>, #tpu.dimension_semantics<arbitrary>], iteration_bounds = array<i64: 1, 1>, scalar_prefetch = 0 : i64, scratch_operands = 1 : i64, tpu.core_type = #tpu.core_type<tc>, window_params = [{transform_indices = @transform_0, window_bounds = array<i64: 16, 128>}, {transform_indices = @transform_1, window_bounds = array<i64: 128, 128>}, {transform_indices = @transform_2, window_bounds = array<i64: 1, 128>}, {transform_indices = @transform_3, window_bounds = array<i64: 128, 128>}, {pipeline_mode = #tpu.pipeline_mode<synchronous>, transform_indices = @transform_4, window_bounds = array<i64: 1, 128>}, {transform_indices = @transform_5, window_bounds = array<i64: 16, 128>}]} {
    %c0_i32 = arith.constant 0 : i32
    %0 = arith.cmpi eq, %arg1, %c0_i32 : i32
    %1 = arith.extui %0 : i1 to i32
    %c0_i32_0 = arith.constant 0 : i32
    %2 = arith.cmpi ne, %1, %c0_i32_0 : i32
    scf.if %2 {
      %cst_16 = arith.constant 0.000000e+00 : f32
      %19 = vector.broadcast %cst_16 : f32 to vector<16x128xf32>
      %c0_17 = arith.constant 0 : index
      %c0_18 = arith.constant 0 : index
      %20 = vector.load %arg8[%c0_17, %c0_18] : memref<16x128xf32, #tpu.memory_space<vmem>>, vector<16x128xf32>
      tpu.vector_store %arg8[%c0_17, %c0_18], %19 {strides = array<i32>} : memref<16x128xf32, #tpu.memory_space<vmem>>, vector<16x128xf32>,
    } else {
    }
    %c0 = arith.constant 0 : index
    %c0_1 = arith.constant 0 : index
    %3 = vector.load %arg2[%c0, %c0_1] : memref<16x128xf32, #tpu.memory_space<vmem>>, vector<16x128xf32>
    %c0_2 = arith.constant 0 : index
    %c0_3 = arith.constant 0 : index
    %4 = vector.load %arg3[%c0_2, %c0_3] : memref<128x128xf32, #tpu.memory_space<vmem>>, vector<128x128xf32>
    %cst = arith.constant dense<0.000000e+00> : vector<16x128xf32>
    %5 = tpu.matmul %3, %4, %cst {dimension_numbers = #tpu.dot_dimension_numbers<[1], [0], [0], [1], [0, 0, 1, 1], [], []>} : vector<16x128xf32>, vector<128x128xf32>, vector<16x128xf32> -> vector<16x128xf32>
    %c0_4 = arith.constant 0 : index
    %c0_5 = arith.constant 0 : index
    %6 = vector.load %arg4[%c0_4, %c0_5] : memref<1x128xf32, #tpu.memory_space<vmem>>, vector<1x128xf32>
    %7 = vector.broadcast %6 : vector<1x128xf32> to vector<16x128xf32>
    %8 = arith.addf %5, %7 : vector<16x128xf32>
    %cst_6 = arith.constant 0.000000e+00 : f32
    %9 = vector.broadcast %cst_6 : f32 to vector<16x128xf32>
    %10 = arith.maximumf %8, %9 : vector<16x128xf32>
    %c0_7 = arith.constant 0 : index
    %c0_8 = arith.constant 0 : index
    %11 = vector.load %arg8[%c0_7, %c0_8] : memref<16x128xf32, #tpu.memory_space<vmem>>, vector<16x128xf32>
    %c0_9 = arith.constant 0 : index
    %c0_10 = arith.constant 0 : index
    %12 = vector.load %arg5[%c0_9, %c0_10] : memref<128x128xf32, #tpu.memory_space<vmem>>, vector<128x128xf32>
    %cst_11 = arith.constant dense<0.000000e+00> : vector<16x128xf32>
    %13 = tpu.matmul %10, %12, %cst_11 {dimension_numbers = #tpu.dot_dimension_numbers<[1], [0], [0], [1], [0, 0, 1, 1], [], []>} : vector<16x128xf32>, vector<128x128xf32>, vector<16x128xf32> -> vector<16x128xf32>
    %14 = arith.addf %11, %13 : vector<16x128xf32>
    %c0_12 = arith.constant 0 : index
    %c0_13 = arith.constant 0 : index
    %15 = vector.load %arg8[%c0_12, %c0_13] : memref<16x128xf32, #tpu.memory_space<vmem>>, vector<16x128xf32>
    tpu.vector_store %arg8[%c0_12, %c0_13], %14 {strides = array<i32>} : memref<16x128xf32, #tpu.memory_space<vmem>>, vector<16x128xf32>,
    %c0_i32_14 = arith.constant 0 : i32
    %16 = arith.cmpi eq, %arg1, %c0_i32_14 : i32
    %17 = arith.extui %16 : i1 to i32
    %c0_i32_15 = arith.constant 0 : i32
    %18 = arith.cmpi ne, %17, %c0_i32_15 : i32
    scf.if %18 {
      %c0_16 = arith.constant 0 : index
      %c0_17 = arith.constant 0 : index
      %19 = vector.load %arg8[%c0_16, %c0_17] : memref<16x128xf32, #tpu.memory_space<vmem>>, vector<16x128xf32>
      %c0_18 = arith.constant 0 : index
      %c0_19 = arith.constant 0 : index
      %20 = vector.load %arg6[%c0_18, %c0_19] : memref<1x128xf32, #tpu.memory_space<vmem>>, vector<1x128xf32>
      %21 = vector.broadcast %20 : vector<1x128xf32> to vector<16x128xf32>
      %22 = arith.addf %19, %21 : vector<16x128xf32>
      %c0_20 = arith.constant 0 : index
      %c0_21 = arith.constant 0 : index
      %23 = vector.load %arg7[%c0_20, %c0_21] : memref<16x128xf32, #tpu.memory_space<vmem>>, vector<16x128xf32>
      tpu.vector_store %arg7[%c0_20, %c0_21], %22 {strides = array<i32>} : memref<16x128xf32, #tpu.memory_space<vmem>>, vector<16x128xf32>,
    } else {
    }
    return
  }
  func.func @transform_0(%arg0: i32, %arg1: i32) -> (i32, i32) {
    %c0_i32 = arith.constant 0 : i32
    %c0_i32_0 = arith.constant 0 : i32
    return %arg0, %c0_i32 : i32, i32
  }
  func.func @transform_1(%arg0: i32, %arg1: i32) -> (i32, i32) {
    %c0_i32 = arith.constant 0 : i32
    %c0_i32_0 = arith.constant 0 : i32
    return %c0_i32, %arg1 : i32, i32
  }
  func.func @transform_2(%arg0: i32, %arg1: i32) -> (i32, i32) {
    %c0_i32 = arith.constant 0 : i32
    %c0_i32_0 = arith.constant 0 : i32
    return %c0_i32, %arg1 : i32, i32
  }
  func.func @transform_3(%arg0: i32, %arg1: i32) -> (i32, i32) {
    %c0_i32 = arith.constant 0 : i32
    %c0_i32_0 = arith.constant 0 : i32
    return %arg1, %c0_i32 : i32, i32
  }
  func.func @transform_4(%arg0: i32, %arg1: i32) -> (i32, i32) {
    %c0_i32 = arith.constant 0 : i32
    %c0_i32_0 = arith.constant 0 : i32
    %c0_i32_1 = arith.constant 0 : i32
    return %c0_i32, %c0_i32_0 : i32, i32
  }
  func.func @transform_5(%arg0: i32, %arg1: i32) -> (i32, i32) {
    %c0_i32 = arith.constant 0 : i32
    %c0_i32_0 = arith.constant 0 : i32
    return %arg0, %c0_i32 : i32, i32
  }
}

</mosaic_0001>

<llo_original>
// kernel: tpu_custom_call.1
$region0: #{tpu_custom_call.1}
  #allocation0 [shape = 'u32[]', space=smem, size = 0x4, offset = 0x4, fixed_abs, tag = 'smem constant byte address 0x4 - core index']
  #allocation1 [shape = 'u32[144,128]{1,0:T(1,128)}', space=vmem, size = 0x12000, scoped, tag = 'internal scratch']
  %s0 = inlined_call_operand.hbm [shape: f32[8,128], index: 0, kind: input, shape index: {}]
  %s1 = inlined_call_operand.hbm [shape: f32[8,128], index: 1, kind: output, shape index: {}]
  %s2 = sld [smem:[#allocation0]]
  $region18: #{tpu_custom_call.1} parent=0
    _
  %s4 = ssub.s32 1, %s2
  %s5 = scalar_select 0, %s4, %s2
  $region1: #{tpu_custom_call.1} parent=0
    #allocation2 [shape = 'u8[4096]{0}', space=vmem, size = 0x1000, scoped, tag = 'input window, operand 0, single buffered']
    #allocation3 [shape = 's32[1]{0}', space=sflag, size = 0x4, scoped, tag = 'scoped memory for tpu_custom_call.1']
    #allocation4 [shape = 's32[1]{0}', space=sflag, size = 0x4, scoped, tag = 'scoped memory for tpu_custom_call.1']
    #allocation5 [shape = 'u8[4096]{0}', space=vmem, size = 0x1000, scoped, tag = 'output window, operand 0, single buffered']
    %6 = vsyncpa [#allocation3], 0
    %7 = vsyncpa [#allocation4], 0
    // Predicated region
    $region2: #{tpu_custom_call.1} parent=1 // pred_check
      _
    $region3: #{tpu_custom_call.1} parent=1 // pred_check_branch
      %9 = sbr.rel (0) target = $region5
    $region4: #{tpu_custom_call.1} parent=1 // pred_region
      %s11 = ssub.s32 128, 128
      %12 = vsyncadd [#allocation3], %s11
      %s14 = sshll.u32 [#allocation2], 4
      %s15 = int_to_ptr.vmem [resolvable:$true] %s14
      %17 = dma.hbm_to_vmem [thread:$0]  %s0, 128, %s15, [#allocation3]
    $region5: #{tpu_custom_call.1} parent=1 // pred_fallthru
      _
    // Predicated region
    $region6: #{tpu_custom_call.1} parent=1 // pred_check
      _
    $region7: #{tpu_custom_call.1} parent=1 // pred_check_branch
      %19 = sbr.rel (0) target = $region9
    $region8: #{tpu_custom_call.1} parent=1 // pred_region
      %20 = dma.done [#allocation3], 128
    $region9: #{tpu_custom_call.1} parent=1 // pred_fallthru
      _
    %v21 = vld [vmem:[#allocation2] sm:$0xff]
    %22 = vst [vmem:[#allocation5] sm:$0xff] %v21
    // Predicated region
    $region10: #{tpu_custom_call.1} parent=1 // pred_check
      _
    $region11: #{tpu_custom_call.1} parent=1 // pred_check_branch
      %24 = sbr.rel (0) target = $region13
    $region12: #{tpu_custom_call.1} parent=1 // pred_region
      %s26 = ssub.s32 128, 128
      %27 = vsyncadd [#allocation4], %s26
      %s29 = sshll.u32 [#allocation5], 4
      %s30 = int_to_ptr.vmem [resolvable:$true] %s29
      %32 = dma.vmem_to_hbm [thread:$0]  %s30, 128, %s1, [#allocation4]
    $region13: #{tpu_custom_call.1} parent=1 // pred_fallthru
      _
    // Predicated region
    $region14: #{tpu_custom_call.1} parent=1 // pred_check
      _
    $region15: #{tpu_custom_call.1} parent=1 // pred_check_branch
      %34 = sbr.rel (0) target = $region17
    $region16: #{tpu_custom_call.1} parent=1 // pred_region
      %35 = dma.done [#allocation4], 128
    $region17: #{tpu_custom_call.1} parent=1 // pred_fallthru
      _
    %36 = vsyncpa [#allocation3], 1
    %37 = vsyncpa [#allocation4], 1

// kernel: tpu_custom_call.1
$region0: #{tpu_custom_call.1}
  #allocation0 [shape = 'u32[]', space=smem, size = 0x4, offset = 0x4, fixed_abs, tag = 'smem constant byte address 0x4 - core index']
  #allocation1 [shape = 'u32[144,128]{1,0:T(1,128)}', space=vmem, size = 0x12000, scoped, tag = 'internal scratch']
  #allocation2 [shape = 'f32[16,128]{1,0:T(8,128)}', space=vmem, size = 0x2000, scoped, tag = 'scratch operand']
  %s0 = inlined_call_operand.hbm [shape: f32[16,128], index: 0, kind: input, shape index: {}]
  %s1 = inlined_call_operand.hbm [shape: f32[128,128], index: 1, kind: input, shape index: {}]
  %s2 = inlined_call_operand.vmem [shape: f32[1,128], index: 2, kind: input, shape index: {}]
  %s3 = inlined_call_operand.hbm [shape: f32[128,128], index: 3, kind: input, shape index: {}]
  %s4 = inlined_call_operand.vmem [shape: f32[1,128], index: 4, kind: input, shape index: {}]
  %s5 = inlined_call_operand.hbm [shape: f32[16,128], index: 5, kind: output, shape index: {}]
  %s6 = sld [smem:[#allocation0]]
  $region50: #{tpu_custom_call.1} parent=0
    _
  %s8 = ssub.s32 1, %s6
  %s9 = scalar_select 0, %s8, %s6
  $region1: #{tpu_custom_call.1} parent=0
    #allocation3 [shape = 'u8[8192]{0}', space=vmem, size = 0x2000, scoped, tag = 'input window, operand 0, single buffered']
    #allocation4 [shape = 's32[1]{0}', space=sflag, size = 0x4, scoped, tag = 'scoped memory for tpu_custom_call.1']
    #allocation5 [shape = 's32[1]{0}', space=sflag, size = 0x4, scoped, tag = 'scoped memory for tpu_custom_call.1']
    #allocation6 [shape = 'u8[65536]{0}', space=vmem, size = 0x10000, scoped, tag = 'input window, operand 1, single buffered']
    #allocation7 [shape = 's32[1]{0}', space=sflag, size = 0x4, scoped, tag = 'scoped memory for tpu_custom_call.1']
    #allocation8 [shape = 'u8[65536]{0}', space=vmem, size = 0x10000, scoped, tag = 'input window, operand 3, single buffered']
    #allocation9 [shape = 'u8[8192]{0}', space=vmem, size = 0x2000, scoped, tag = 'output window, operand 0, single buffered']
    %10 = vsyncpa [#allocation4], 0
    %11 = vsyncpa [#allocation7], 0
    %12 = vsyncpa [#allocation5], 0
    // Predicated region
    $region2: #{tpu_custom_call.1} parent=1 // pred_check
      _
    $region3: #{tpu_custom_call.1} parent=1 // pred_check_branch
      %14 = sbr.rel (0) target = $region5
    $region4: #{tpu_custom_call.1} parent=1 // pred_region
      %s16 = ssub.s32 256, 256
      %17 = vsyncadd [#allocation4], %s16
      %s18 = sshll.u32 [#allocation3], 4
      %s19 = int_to_ptr.vmem [resolvable:$true] %s18
      %24 = dma.hbm_to_vmem [thread:$0]  %s0, 256, %s19, [#allocation4], 128, 128, 8
    $region5: #{tpu_custom_call.1} parent=1 // pred_fallthru
      _
    // Predicated region
    $region6: #{tpu_custom_call.1} parent=1 // pred_check
      _
    $region7: #{tpu_custom_call.1} parent=1 // pred_check_branch
      %26 = sbr.rel (0) target = $region9
    $region8: #{tpu_custom_call.1} parent=1 // pred_region
      %s28 = ssub.s32 2048, 2048
      %29 = vsyncadd [#allocation7], %s28
      %s30 = sshll.u32 [#allocation6], 4
      %s31 = int_to_ptr.vmem [resolvable:$true] %s30
      %36 = dma.hbm_to_vmem [thread:$0]  %s1, 2048, %s31, [#allocation7], 128, 128, 8
    $region9: #{tpu_custom_call.1} parent=1 // pred_fallthru
      _
    // Predicated region
    $region10: #{tpu_custom_call.1} parent=1 // pred_check
      _
    $region11: #{tpu_custom_call.1} parent=1 // pred_check_branch
      %38 = sbr.rel (0) target = $region13
    $region12: #{tpu_custom_call.1} parent=1 // pred_region
      _
    $region13: #{tpu_custom_call.1} parent=1 // pred_fallthru
      _
    // Predicated region
    $region14: #{tpu_custom_call.1} parent=1 // pred_check
      _
    $region15: #{tpu_custom_call.1} parent=1 // pred_check_branch
      %40 = sbr.rel (0) target = $region17
    $region16: #{tpu_custom_call.1} parent=1 // pred_region
      %s42 = ssub.s32 2048, 2048
      %43 = vsyncadd [#allocation7], %s42
      %s44 = sshll.u32 [#allocation8], 4
      %s45 = int_to_ptr.vmem [resolvable:$true] %s44
      %50 = dma.hbm_to_vmem [thread:$0]  %s3, 2048, %s45, [#allocation7], 128, 128, 8
    $region17: #{tpu_custom_call.1} parent=1 // pred_fallthru
      _
    // Predicated region
    $region18: #{tpu_custom_call.1} parent=1 // pred_check
      _
    $region19: #{tpu_custom_call.1} parent=1 // pred_check_branch
      %52 = sbr.rel (0) target = $region21
    $region20: #{tpu_custom_call.1} parent=1 // pred_region
      _
    $region21: #{tpu_custom_call.1} parent=1 // pred_fallthru
      _
    // Predicated region
    $region22: #{tpu_custom_call.1} parent=1 // pred_check
      _
    $region23: #{tpu_custom_call.1} parent=1 // pred_check_branch
      %54 = sbr.rel (0) target = $region25
    $region24: #{tpu_custom_call.1} parent=1 // pred_region
      %55 = dma.done [#allocation4], 256
    $region25: #{tpu_custom_call.1} parent=1 // pred_fallthru
      _
    // Predicated region
    $region26: #{tpu_custom_call.1} parent=1 // pred_check
      _
    $region27: #{tpu_custom_call.1} parent=1 // pred_check_branch
      %57 = sbr.rel (0) target = $region29
    $region28: #{tpu_custom_call.1} parent=1 // pred_region
      %58 = dma.done [#allocation7], 2048
    $region29: #{tpu_custom_call.1} parent=1 // pred_fallthru
      _
    // Predicated region
    $region30: #{tpu_custom_call.1} parent=1 // pred_check
      _
    $region31: #{tpu_custom_call.1} parent=1 // pred_check_branch
      %60 = sbr.rel (0) target = $region33
    $region32: #{tpu_custom_call.1} parent=1 // pred_region
      %61 = dma.done [#allocation7], 2048
    $region33: #{tpu_custom_call.1} parent=1 // pred_fallthru
      _
    %p62 = scmp.eq.s32.totalorder 0, 0
    // Predicated region
    $region34: #{tpu_custom_call.1} parent=1 // pred_check
      %p63 = pneg %p62
    $region35: #{tpu_custom_call.1} parent=1 // pred_check_branch
      %65 = sbr.rel (%p63) target = $region37
    $region36: #{tpu_custom_call.1} parent=1 // pred_region
      %66 = vst [vmem:[#allocation2] sm:$0xff] 0.0
      %67 = vst [vmem:[#allocation2 + $0x8] sm:$0xff] 0.0
    $region37: #{tpu_custom_call.1} parent=1 // pred_fallthru
      _
    %v68 = vld [vmem:[#allocation3] sm:$0xff]
    %v69 = vld [vmem:[#allocation3 + $0x8] sm:$0xff]
    %v70 = vld [vmem:[#allocation6] sm:$0xff]
    %v71 = vld [vmem:[#allocation6 + $0x8] sm:$0xff]
    %v72 = vld [vmem:[#allocation6 + $0x10] sm:$0xff]
    %v73 = vld [vmem:[#allocation6 + $0x18] sm:$0xff]
    %v74 = vld [vmem:[#allocation6 + $0x20] sm:$0xff]
    %v75 = vld [vmem:[#allocation6 + $0x28] sm:$0xff]
    %v76 = vld [vmem:[#allocation6 + $0x30] sm:$0xff]
    %v77 = vld [vmem:[#allocation6 + $0x38] sm:$0xff]
    %v78 = vld [vmem:[#allocation6 + $0x40] sm:$0xff]
    %v79 = vld [vmem:[#allocation6 + $0x48] sm:$0xff]
    %v80 = vld [vmem:[#allocation6 + $0x50] sm:$0xff]
    %v81 = vld [vmem:[#allocation6 + $0x58] sm:$0xff]
    %v82 = vld [vmem:[#allocation6 + $0x60] sm:$0xff]
    %v83 = vld [vmem:[#allocation6 + $0x68] sm:$0xff]
    %v84 = vld [vmem:[#allocation6 + $0x70] sm:$0xff]
    %v85 = vld [vmem:[#allocation6 + $0x78] sm:$0xff]
    %v86 = vld [vmem:[%s2] sm:$0x1]
    %v88 = vlaneseq
    %v89 = vshrl.u32 %v88, 7
    %v90 = vsub.s32 0, %v89
    %v91 = vrot.slane %v86, %v90
    %93 = vmatprep.subr.mxu0 0.0
    %94 = vmatpush1.msra.mxu0 %v85
    %95 = vmatprep.subr.mxu0 0.0
    %96 = vmatpush1.msra.mxu0 %v84
    %97 = vmatprep.subr.mxu0 0.0
    %98 = vmatpush1.msra.mxu0 %v83
    %99 = vmatprep.subr.mxu0 0.0
    %100 = vmatpush1.msra.mxu0 %v82
    %101 = vmatprep.subr.mxu0 0.0
    %102 = vmatpush1.msra.mxu0 %v81
    %103 = vmatprep.subr.mxu0 0.0
    %104 = vmatpush1.msra.mxu0 %v80
    %105 = vmatprep.subr.mxu0 0.0
    %106 = vmatpush1.msra.mxu0 %v79
    %107 = vmatprep.subr.mxu0 0.0
    %108 = vmatpush1.msra.mxu0 %v78
    %109 = vmatprep.subr.mxu0 0.0
    %110 = vmatpush1.msra.mxu0 %v77
    %111 = vmatprep.subr.mxu0 0.0
    %112 = vmatpush1.msra.mxu0 %v76
    %113 = vmatprep.subr.mxu0 0.0
    %114 = vmatpush1.msra.mxu0 %v75
    %115 = vmatprep.subr.mxu0 0.0
    %116 = vmatpush1.msra.mxu0 %v74
    %117 = vmatprep.subr.mxu0 0.0
    %118 = vmatpush1.msra.mxu0 %v73
    %119 = vmatprep.subr.mxu0 0.0
    %120 = vmatpush1.msra.mxu0 %v72
    %121 = vmatprep.subr.mxu0 0.0
    %122 = vmatpush1.msra.mxu0 %v71
    %123 = vmatprep.subr.mxu0 0.0
    %124 = vmatpush1.msra.mxu0 %v70
    %125 = vmatprep.subr.mxu0 0.0
    %126 = vmatpush2.msra.mxu0 0.0
    %127 = vmatprep.subr.mxu0 0.0
    %128 = vmatpush2.msra.mxu0 0.0
    %129 = vmatprep.subr.mxu0 0.0
    %130 = vmatpush2.msra.mxu0 0.0
    %131 = vmatprep.subr.mxu0 0.0
    %132 = vmatpush2.msra.mxu0 0.0
    %133 = vmatprep.subr.mxu0 0.0
    %134 = vmatpush2.msra.mxu0 0.0
    %135 = vmatprep.subr.mxu0 0.0
    %136 = vmatpush2.msra.mxu0 0.0
    %137 = vmatprep.subr.mxu0 0.0
    %138 = vmatpush2.msra.mxu0 0.0
    %139 = vmatprep.subr.mxu0 0.0
    %140 = vmatpush2.msra.mxu0 0.0
    %141 = vmatprep.subr.mxu0 0.0
    %142 = vmatpush2.msra.mxu0 0.0
    %143 = vmatprep.subr.mxu0 0.0
    %144 = vmatpush2.msra.mxu0 0.0
    %145 = vmatprep.subr.mxu0 0.0
    %146 = vmatpush2.msra.mxu0 0.0
    %147 = vmatprep.subr.mxu0 0.0
    %148 = vmatpush2.msra.mxu0 0.0
    %149 = vmatprep.subr.mxu0 0.0
    %150 = vmatpush2.msra.mxu0 0.0
    %151 = vmatprep.subr.mxu0 0.0
    %152 = vmatpush2.msra.mxu0 0.0
    %153 = vmatprep.subr.mxu0 0.0
    %154 = vmatpush2.msra.mxu0 0.0
    %155 = vmatprep.subr.mxu0 0.0
    %156 = vmatpush2.msra.mxu0 0.0
    %157 = vmatprep.mubr.f32.mxu0 0.0
    %158 = vmatmul.mubr.f32.gmra.mxu0 %v68
    %v159 = vpop.f32.mrf.mxu0
    %v160 = vadd.f32 %v91, %v159
    %v161 = vpop.f32.mrf.mxu0
    %162 = vmatprep.mubr.f32.mxu0 0.0
    %163 = vmatmul.mubr.f32.gmra.mxu0 %v69
    %v164 = vpop.f32.mrf.mxu0
    %v165 = vadd.f32 %v91, %v164
    %v166 = vpop.f32.mrf.mxu0
    %167 = vdwg.mxu0
    %v168 = vmax.f32 %v160, 0.0
    %v169 = vmax.f32 %v165, 0.0
    %v170 = vld [vmem:[#allocation2] sm:$0xff]
    %v171 = vld [vmem:[#allocation2 + $0x8] sm:$0xff]
    %v172 = vld [vmem:[#allocation8] sm:$0xff]
    %v173 = vld [vmem:[#allocation8 + $0x8] sm:$0xff]
    %v174 = vld [vmem:[#allocation8 + $0x10] sm:$0xff]
    %v175 = vld [vmem:[#allocation8 + $0x18] sm:$0xff]
    %v176 = vld [vmem:[#allocation8 + $0x20] sm:$0xff]
    %v177 = vld [vmem:[#allocation8 + $0x28] sm:$0xff]
    %v178 = vld [vmem:[#allocation8 + $0x30] sm:$0xff]
    %v179 = vld [vmem:[#allocation8 + $0x38] sm:$0xff]
    %v180 = vld [vmem:[#allocation8 + $0x40] sm:$0xff]
    %v181 = vld [vmem:[#allocation8 + $0x48] sm:$0xff]
    %v182 = vld [vmem:[#allocation8 + $0x50] sm:$0xff]
    %v183 = vld [vmem:[#allocation8 + $0x58] sm:$0xff]
    %v184 = vld [vmem:[#allocation8 + $0x60] sm:$0xff]
    %v185 = vld [vmem:[#allocation8 + $0x68] sm:$0xff]
    %v186 = vld [vmem:[#allocation8 + $0x70] sm:$0xff]
    %v187 = vld [vmem:[#allocation8 + $0x78] sm:$0xff]
    %188 = vmatprep.subr.mxu0 0.0
    %189 = vmatpush1.msra.mxu0 %v187
    %190 = vmatprep.subr.mxu0 0.0
    %191 = vmatpush1.msra.mxu0 %v186
    %192 = vmatprep.subr.mxu0 0.0
    %193 = vmatpush1.msra.mxu0 %v185
    %194 = vmatprep.subr.mxu0 0.0
    %195 = vmatpush1.msra.mxu0 %v184
    %196 = vmatprep.subr.mxu0 0.0
    %197 = vmatpush1.msra.mxu0 %v183
    %198 = vmatprep.subr.mxu0 0.0
    %199 = vmatpush1.msra.mxu0 %v182
    %200 = vmatprep.subr.mxu0 0.0
    %201 = vmatpush1.msra.mxu0 %v181
    %202 = vmatprep.subr.mxu0 0.0
    %203 = vmatpush1.msra.mxu0 %v180
    %204 = vmatprep.subr.mxu0 0.0
    %205 = vmatpush1.msra.mxu0 %v179
    %206 = vmatprep.subr.mxu0 0.0
    %207 = vmatpush1.msra.mxu0 %v178
    %208 = vmatprep.subr.mxu0 0.0
    %209 = vmatpush1.msra.mxu0 %v177
    %210 = vmatprep.subr.mxu0 0.0
    %211 = vmatpush1.msra.mxu0 %v176
    %212 = vmatprep.subr.mxu0 0.0
    %213 = vmatpush1.msra.mxu0 %v175
    %214 = vmatprep.subr.mxu0 0.0
    %215 = vmatpush1.msra.mxu0 %v174
    %216 = vmatprep.subr.mxu0 0.0
    %217 = vmatpush1.msra.mxu0 %v173
    %218 = vmatprep.subr.mxu0 0.0
    %219 = vmatpush1.msra.mxu0 %v172
    %220 = vmatprep.subr.mxu0 0.0
    %221 = vmatpush2.msra.mxu0 0.0
    %222 = vmatprep.subr.mxu0 0.0
    %223 = vmatpush2.msra.mxu0 0.0
    %224 = vmatprep.subr.mxu0 0.0
    %225 = vmatpush2.msra.mxu0 0.0
    %226 = vmatprep.subr.mxu0 0.0
    %227 = vmatpush2.msra.mxu0 0.0
    %228 = vmatprep.subr.mxu0 0.0
    %229 = vmatpush2.msra.mxu0 0.0
    %230 = vmatprep.subr.mxu0 0.0
    %231 = vmatpush2.msra.mxu0 0.0
    %232 = vmatprep.subr.mxu0 0.0
    %233 = vmatpush2.msra.mxu0 0.0
    %234 = vmatprep.subr.mxu0 0.0
    %235 = vmatpush2.msra.mxu0 0.0
    %236 = vmatprep.subr.mxu0 0.0
    %237 = vmatpush2.msra.mxu0 0.0
    %238 = vmatprep.subr.mxu0 0.0
    %239 = vmatpush2.msra.mxu0 0.0
    %240 = vmatprep.subr.mxu0 0.0
    %241 = vmatpush2.msra.mxu0 0.0
    %242 = vmatprep.subr.mxu0 0.0
    %243 = vmatpush2.msra.mxu0 0.0
    %244 = vmatprep.subr.mxu0 0.0
    %245 = vmatpush2.msra.mxu0 0.0
    %246 = vmatprep.subr.mxu0 0.0
    %247 = vmatpush2.msra.mxu0 0.0
    %248 = vmatprep.subr.mxu0 0.0
    %249 = vmatpush2.msra.mxu0 0.0
    %250 = vmatprep.subr.mxu0 0.0
    %251 = vmatpush2.msra.mxu0 0.0
    %252 = vmatprep.mubr.f32.mxu0 0.0
    %253 = vmatmul.mubr.f32.gmra.mxu0 %v168
    %v254 = vpop.f32.mrf.mxu0
    %v255 = vadd.f32 0.0, %v254
    %v256 = vpop.f32.mrf.mxu0
    %257 = vmatprep.mubr.f32.mxu0 0.0
    %258 = vmatmul.mubr.f32.gmra.mxu0 %v169
    %v259 = vpop.f32.mrf.mxu0
    %v260 = vadd.f32 0.0, %v259
    %v261 = vpop.f32.mrf.mxu0
    %262 = vdwg.mxu0
    %v263 = vadd.f32 %v170, %v255
    %v264 = vadd.f32 %v171, %v260
    %265 = vst [vmem:[#allocation2] sm:$0xff] %v263
    %266 = vst [vmem:[#allocation2 + $0x8] sm:$0xff] %v264
    // Predicated region
    $region38: #{tpu_custom_call.1} parent=1 // pred_check
      %p267 = pneg %p62
    $region39: #{tpu_custom_call.1} parent=1 // pred_check_branch
      %269 = sbr.rel (%p267) target = $region41
    $region40: #{tpu_custom_call.1} parent=1 // pred_region
      %v270 = vld [vmem:[#allocation2] sm:$0xff]
      %v271 = vld [vmem:[#allocation2 + $0x8] sm:$0xff]
      %v272 = vld [vmem:[%s4] sm:$0x1]
      %v274 = vlaneseq
      %v275 = vshrl.u32 %v274, 7
      %v276 = vsub.s32 0, %v275
      %v277 = vrot.slane %v272, %v276
      %v279 = vadd.f32 %v270, %v277
      %v280 = vadd.f32 %v271, %v277
      %281 = vst [vmem:[#allocation9] sm:$0xff] %v279
      %282 = vst [vmem:[#allocation9 + $0x8] sm:$0xff] %v280
    $region41: #{tpu_custom_call.1} parent=1 // pred_fallthru
      _
    // Predicated region
    $region42: #{tpu_custom_call.1} parent=1 // pred_check
      _
    $region43: #{tpu_custom_call.1} parent=1 // pred_check_branch
      %284 = sbr.rel (0) target = $region45
    $region44: #{tpu_custom_call.1} parent=1 // pred_region
      %s286 = ssub.s32 256, 256
      %287 = vsyncadd [#allocation5], %s286
      %s288 = sshll.u32 [#allocation9], 4
      %s289 = int_to_ptr.vmem [resolvable:$true] %s288
      %294 = dma.vmem_to_hbm [thread:$0]  %s289, 256, %s5, [#allocation5], 128, 128, 8
    $region45: #{tpu_custom_call.1} parent=1 // pred_fallthru
      _
    // Predicated region
    $region46: #{tpu_custom_call.1} parent=1 // pred_check
      _
    $region47: #{tpu_custom_call.1} parent=1 // pred_check_branch
      %296 = sbr.rel (0) target = $region49
    $region48: #{tpu_custom_call.1} parent=1 // pred_region
      %297 = dma.done [#allocation5], 256
    $region49: #{tpu_custom_call.1} parent=1 // pred_fallthru
      _
    %298 = vsyncpa [#allocation4], 1
    %299 = vsyncpa [#allocation7], 1
    %300 = vsyncpa [#allocation5], 1

</llo_original>
